<compile_context>
chip_gen: v7x
topology: tpu7x:2x2x1
jax: 0.10.0
libtpu: 0.0.40
codegen_flags: <defaults>
</compile_context>

<pallas_src>
import functools

import jax
import jax.numpy as jnp
from jax.experimental import pallas as pl
from jax.experimental.pallas import tpu as pltpu


def _merge_proj_ln_kernel(x_ref, w_ref, b_ref, g_ref, beta_ref, o_ref, *, eps):
    # x_ref:    (t_m, K)   VMEM  -- channel-last patch rows
    # w_ref:    (K, O)     VMEM  -- compact projection weight (resident)
    # b_ref:    (1, O)     VMEM  f32 -- linear bias
    # g_ref:    (1, O)     VMEM  f32 -- LayerNorm gamma
    # beta_ref: (1, O)     VMEM  f32 -- LayerNorm beta
    # o_ref:    (t_m, O)   VMEM  -- output rows (packed, contiguous store)

    # Single MXU contraction over the full K (folds channels + patch window).
    y = jnp.dot(x_ref[...], w_ref[...], preferred_element_type=jnp.float32)
    y = y + b_ref[...]                                   # broadcast (1, O)

    # LayerNorm over the out-channel (lane) axis, on the packed slab.
    mu = jnp.mean(y, axis=-1, keepdims=True)
    d = y - mu
    var = jnp.mean(d * d, axis=-1, keepdims=True)        # biased 1/N, as nn.LayerNorm
    inv_std = jax.lax.rsqrt(var + jnp.float32(eps))      # EUP

    o_ref[...] = (d * inv_std * g_ref[...] + beta_ref[...]).astype(o_ref.dtype)


def merge2d_pallas(x, proj_w, proj_b, ln_g, ln_b, kernel_size, *, eps=1e-5):
    """x: NCHW [B, C, H*hk, W*wk].  proj_w: (out_ch, C*hk*wk) like nn.Linear.weight."""
    hk, wk = kernel_size
    B, C, Hfull, Wfull = x.shape
    H, W = Hfull // hk, Wfull // wk
    K = C * hk * wk
    O = proj_w.shape[0]
    M = B * H * W

    # One wrapper-side relayout to channel-last patch rows, feature order (hk, wk, c)
    # matching 'b c (h hk) (w wk) -> b h w (hk wk c)'.
    xp = x.reshape(B, C, H, hk, W, wk)
    xp = jnp.transpose(xp, (0, 2, 4, 3, 5, 1)).reshape(M, K)

    # Compact weight (K, O); feature order of K matches xp.  (Kept in the
    # activation dtype; for the f32 toy case this is a no-op.)
    w_t = jnp.transpose(proj_w).astype(x.dtype)
    b2 = proj_b.reshape(1, O).astype(jnp.float32)
    g2 = ln_g.reshape(1, O).astype(jnp.float32)
    be2 = ln_b.reshape(1, O).astype(jnp.float32)

    # --- row-tile sizing from a VMEM budget (safe on v5e/v6e/v7x defaults) ---
    itemsize = jnp.dtype(x.dtype).itemsize
    k_pad = ((K + 127) // 128) * 128
    o_pad = ((O + 127) // 128) * 128
    # double-buffered input + output blocks, per row of the tile
    row_bytes = 2 * (k_pad + o_pad) * itemsize
    budget = 12 * 1024 * 1024
    t_m_cap = max(8, (budget // row_bytes) // 8 * 8)

    if M <= 8:
        t_m = M
    else:
        # enough steps for pipelining and for both v7x TensorCores
        min_steps = 8 if M >= 128 else (4 if M >= 32 else 2)
        t_m_target = max(8, ((M // min_steps) // 8) * 8)
        t_m = max(8, min(t_m_cap, t_m_target, 1024))
    grid_m = pl.cdiv(M, t_m)

    cost = pl.CostEstimate(
        flops=2 * M * K * O,
        transcendentals=M,
        bytes_accessed=(M * K + M * O + K * O) * itemsize,
    )

    out2d = pl.pallas_call(
        functools.partial(_merge_proj_ln_kernel, eps=eps),
        out_shape=jax.ShapeDtypeStruct((M, O), x.dtype),
        grid_spec=pltpu.PrefetchScalarGridSpec(
            num_scalar_prefetch=0,
            grid=(grid_m,),
            in_specs=[
                pl.BlockSpec((t_m, K), lambda i: (i, 0)),
                pl.BlockSpec((K, O), lambda i: (0, 0)),    # invariant, tiny, resident
                pl.BlockSpec((1, O), lambda i: (0, 0)),
                pl.BlockSpec((1, O), lambda i: (0, 0)),
                pl.BlockSpec((1, O), lambda i: (0, 0)),
            ],
            out_specs=pl.BlockSpec((t_m, O), lambda i: (i, 0)),
        ),
        compiler_params=pltpu.CompilerParams(
            dimension_semantics=("parallel",),
            vmem_limit_bytes=48 * 1024 * 1024,
        ),
        cost_estimate=cost,
    )(xp, w_t, b2, g2, be2)

    # Single XLA pass back to NCHW.
    return jnp.transpose(out2d.reshape(B, H, W, O), (0, 3, 1, 2))


def reference_merge2d(x, proj_w, proj_b, ln_g, ln_b, kernel_size, eps=1e-5):
    hk, wk = kernel_size
    B, C, Hfull, Wfull = x.shape
    H, W = Hfull // hk, Wfull // wk
    xr = x.reshape(B, C, H, hk, W, wk)
    xr = jnp.transpose(xr, (0, 2, 4, 3, 5, 1)).reshape(B, H, W, C * hk * wk)
    y = xr @ proj_w.T + proj_b
    mean = jnp.mean(y, axis=-1, keepdims=True)
    var = jnp.mean((y - mean) ** 2, axis=-1, keepdims=True)
    y = (y - mean) / jnp.sqrt(var + eps) * ln_g + ln_b
    return jnp.transpose(y, (0, 3, 1, 2))


if __name__ == "__main__":
    # Module config: in_channels=4, kernel_size=(2,2) -> total=16, out_channels=8
    B, C, Hfull, Wfull = 2, 4, 16, 16
    kernel_size = (2, 2)
    total = C * kernel_size[0] * kernel_size[1]
    out_channels = total // 2

    key = jax.random.PRNGKey(0)
    k_x, k_w = jax.random.split(key)

    x = jax.random.normal(k_x, (B, C, Hfull, Wfull), dtype=jnp.float32)

    # Deterministic parameter init (mirrors _init_weights):
    #   proj.weight ~ trunc_normal(std=0.02), proj.bias = 0, norm: gamma=1, beta=0
    proj_w = 0.02 * jax.random.truncated_normal(
        k_w, -2.0, 2.0, (out_channels, total), dtype=jnp.float32
    )
    proj_b = jnp.zeros((out_channels,), dtype=jnp.float32)
    ln_g = jnp.ones((out_channels,), dtype=jnp.float32)
    ln_b = jnp.zeros((out_channels,), dtype=jnp.float32)

    out = merge2d_pallas(x, proj_w, proj_b, ln_g, ln_b, kernel_size)
    out = jax.block_until_ready(out)

    ref = reference_merge2d(x, proj_w, proj_b, ln_g, ln_b, kernel_size)
    assert out.shape == (B, out_channels, Hfull // 2, Wfull // 2), out.shape
    assert jnp.allclose(out, ref, atol=1e-5, rtol=1e-5), "mismatch vs reference"

    print("KERNEL_OK")
</pallas_src>

<mosaic_0001>
module attributes {stable_mosaic.version = 11 : i64} {
  func.func @_merge_proj_ln_kernel(%arg0: i32, %arg1: memref<16x16xf32, #tpu.memory_space<vmem>>, %arg2: memref<16x8xf32, #tpu.memory_space<vmem>>, %arg3: memref<1x8xf32, #tpu.memory_space<vmem>>, %arg4: memref<1x8xf32, #tpu.memory_space<vmem>>, %arg5: memref<1x8xf32, #tpu.memory_space<vmem>>, %arg6: memref<16x8xf32, #tpu.memory_space<vmem>>) attributes {dimension_semantics = [#tpu.dimension_semantics<parallel>], iteration_bounds = array<i64: 8>, scalar_prefetch = 0 : i64, scratch_operands = 0 : i64, tpu.core_type = #tpu.core_type<tc>, window_params = [{transform_indices = @transform_0, window_bounds = array<i64: 16, 16>}, {pipeline_mode = #tpu.pipeline_mode<synchronous>, transform_indices = @transform_1, window_bounds = array<i64: 16, 8>}, {pipeline_mode = #tpu.pipeline_mode<synchronous>, transform_indices = @transform_2, window_bounds = array<i64: 1, 8>}, {pipeline_mode = #tpu.pipeline_mode<synchronous>, transform_indices = @transform_3, window_bounds = array<i64: 1, 8>}, {pipeline_mode = #tpu.pipeline_mode<synchronous>, transform_indices = @transform_4, window_bounds = array<i64: 1, 8>}, {transform_indices = @transform_5, window_bounds = array<i64: 16, 8>}]} {
    %c0 = arith.constant 0 : index
    %c0_0 = arith.constant 0 : index
    %0 = vector.load %arg1[%c0, %c0_0] : memref<16x16xf32, #tpu.memory_space<vmem>>, vector<16x16xf32>
    %c0_1 = arith.constant 0 : index
    %c0_2 = arith.constant 0 : index
    %1 = vector.load %arg2[%c0_1, %c0_2] : memref<16x8xf32, #tpu.memory_space<vmem>>, vector<16x8xf32>
    %cst = arith.constant dense<0.000000e+00> : vector<16x8xf32>
    %2 = tpu.matmul %0, %1, %cst {dimension_numbers = #tpu.dot_dimension_numbers<[1], [0], [0], [1], [0, 0, 1, 1], [], []>} : vector<16x16xf32>, vector<16x8xf32>, vector<16x8xf32> -> vector<16x8xf32>
    %c0_3 = arith.constant 0 : index
    %c0_4 = arith.constant 0 : index
    %3 = vector.load %arg3[%c0_3, %c0_4] : memref<1x8xf32, #tpu.memory_space<vmem>>, vector<1x8xf32>
    %4 = vector.broadcast %3 : vector<1x8xf32> to vector<16x8xf32>
    %5 = arith.addf %2, %4 : vector<16x8xf32>
    %cst_5 = arith.constant dense<0.000000e+00> : vector<16xf32>
    %6 = vector.multi_reduction <add>, %5, %cst_5 [1] : vector<16x8xf32> to vector<16xf32>
    %7 = vector.shape_cast %6 : vector<16xf32> to vector<16x1xf32>
    %cst_6 = arith.constant 8.000000e+00 : f32
    %8 = vector.broadcast %cst_6 : f32 to vector<16x1xf32>
    %9 = arith.divf %7, %8 : vector<16x1xf32>
    %10 = vector.broadcast %9 : vector<16x1xf32> to vector<16x8xf32>
    %11 = arith.subf %5, %10 : vector<16x8xf32>
    %12 = arith.mulf %11, %11 : vector<16x8xf32>
    %cst_7 = arith.constant dense<0.000000e+00> : vector<16xf32>
    %13 = vector.multi_reduction <add>, %12, %cst_7 [1] : vector<16x8xf32> to vector<16xf32>
    %14 = vector.shape_cast %13 : vector<16xf32> to vector<16x1xf32>
    %cst_8 = arith.constant 8.000000e+00 : f32
    %15 = vector.broadcast %cst_8 : f32 to vector<16x1xf32>
    %16 = arith.divf %14, %15 : vector<16x1xf32>
    %cst_9 = arith.constant 9.99999974E-6 : f32
    %17 = vector.broadcast %cst_9 : f32 to vector<16x1xf32>
    %18 = arith.addf %16, %17 : vector<16x1xf32>
    %19 = math.rsqrt %18 : vector<16x1xf32>
    %20 = vector.broadcast %19 : vector<16x1xf32> to vector<16x8xf32>
    %21 = arith.mulf %11, %20 : vector<16x8xf32>
    %c0_10 = arith.constant 0 : index
    %c0_11 = arith.constant 0 : index
    %22 = vector.load %arg4[%c0_10, %c0_11] : memref<1x8xf32, #tpu.memory_space<vmem>>, vector<1x8xf32>
    %23 = vector.broadcast %22 : vector<1x8xf32> to vector<16x8xf32>
    %24 = arith.mulf %21, %23 : vector<16x8xf32>
    %c0_12 = arith.constant 0 : index
    %c0_13 = arith.constant 0 : index
    %25 = vector.load %arg5[%c0_12, %c0_13] : memref<1x8xf32, #tpu.memory_space<vmem>>, vector<1x8xf32>
    %26 = vector.broadcast %25 : vector<1x8xf32> to vector<16x8xf32>
    %27 = arith.addf %24, %26 : vector<16x8xf32>
    %c0_14 = arith.constant 0 : index
    %c0_15 = arith.constant 0 : index
    %28 = vector.load %arg6[%c0_14, %c0_15] : memref<16x8xf32, #tpu.memory_space<vmem>>, vector<16x8xf32>
    tpu.vector_store %arg6[%c0_14, %c0_15], %27 {strides = array<i32>} : memref<16x8xf32, #tpu.memory_space<vmem>>, vector<16x8xf32>,
    return
  }
  func.func @transform_0(%arg0: i32) -> (i32, i32) {
    %c0_i32 = arith.constant 0 : i32
    %c0_i32_0 = arith.constant 0 : i32
    return %arg0, %c0_i32 : i32, i32
  }
  func.func @transform_1(%arg0: i32) -> (i32, i32) {
    %c0_i32 = arith.constant 0 : i32
    %c0_i32_0 = arith.constant 0 : i32
    %c0_i32_1 = arith.constant 0 : i32
    return %c0_i32, %c0_i32_0 : i32, i32
  }
  func.func @transform_2(%arg0: i32) -> (i32, i32) {
    %c0_i32 = arith.constant 0 : i32
    %c0_i32_0 = arith.constant 0 : i32
    %c0_i32_1 = arith.constant 0 : i32
    return %c0_i32, %c0_i32_0 : i32, i32
  }
  func.func @transform_3(%arg0: i32) -> (i32, i32) {
    %c0_i32 = arith.constant 0 : i32
    %c0_i32_0 = arith.constant 0 : i32
    %c0_i32_1 = arith.constant 0 : i32
    return %c0_i32, %c0_i32_0 : i32, i32
  }
  func.func @transform_4(%arg0: i32) -> (i32, i32) {
    %c0_i32 = arith.constant 0 : i32
    %c0_i32_0 = arith.constant 0 : i32
    %c0_i32_1 = arith.constant 0 : i32
    return %c0_i32, %c0_i32_0 : i32, i32
  }
  func.func @transform_5(%arg0: i32) -> (i32, i32) {
    %c0_i32 = arith.constant 0 : i32
    %c0_i32_0 = arith.constant 0 : i32
    return %arg0, %c0_i32 : i32, i32
  }
}

</mosaic_0001>

<llo_original>
// kernel: tpu_custom_call.1
$region0: #{tpu_custom_call.1}
  #allocation0 [shape = 'u32[]', space=smem, size = 0x4, offset = 0x4, fixed_abs, tag = 'smem constant byte address 0x4 - core index']
  #allocation1 [shape = 'u32[144,128]{1,0:T(1,128)}', space=vmem, size = 0x12000, scoped, tag = 'internal scratch']
  %s0 = inlined_call_operand.vmem [shape: f32[128,16], index: 0, kind: input, shape index: {}]
  %s1 = inlined_call_operand.vmem [shape: f32[16,8], index: 1, kind: input, shape index: {}]
  %s2 = inlined_call_operand.vmem [shape: f32[1,8], index: 2, kind: input, shape index: {}]
  %s3 = inlined_call_operand.vmem [shape: f32[1,8], index: 3, kind: input, shape index: {}]
  %s4 = inlined_call_operand.vmem [shape: f32[1,8], index: 4, kind: input, shape index: {}]
  %s5 = inlined_call_operand.vmem [shape: f32[128,8], index: 5, kind: output, shape index: {}]
  %s6 = sld [smem:[#allocation0]]
  $region53: #{tpu_custom_call.1} parent=0
    _
  %s8 = ssub.s32 1, %s6
  %s9 = scalar_select 0, %s8, %s6
  loop: start=0, step=1, limit=10
  $region2: #{tpu_custom_call.1} parent=0 // loop_pre_header
    _
  $region3: #{tpu_custom_call.1} parent=0 // loop_header
    %s11 = sphi 0, %s15
    %p12 = scmp.ge.s32.totalorder %s11, 10
    %s21 = sphi 0, %s23
    %s24 = sphi 0, %s21
    %s25 = sphi 0, %s24
    %s41 = sphi 0, %s25
    %s45 = sphi 0, %s45
    %s47 = sphi 0, %s45
    %s48 = sphi 0, %s47
    %s62 = sphi 0, %s48
    %s66 = sphi 0, %s66
    %s68 = sphi 0, %s66
    %s69 = sphi 0, %s68
    %s83 = sphi 0, %s69
    %s87 = sphi 0, %s87
    %s89 = sphi 0, %s87
    %s90 = sphi 0, %s89
    %s104 = sphi 0, %s90
    %s108 = sphi 0, %s108
    %s110 = sphi 0, %s108
    %s111 = sphi 0, %s110
    %s125 = sphi 0, %s111
    %s131 = sphi 0, %s133
    %s134 = sphi 0, %s131
    %s135 = sphi 0, %s134
    %s151 = sphi 0, %s135
  $region4: #{tpu_custom_call.1} parent=0 // loop_header_branch
    %14 = sbr.rel (%p12) target = $region8
  $region5: #{tpu_custom_call.1} parent=0 // loop_body
    %s16 = ssub.s32 %s11, 1
    %s17 = ssub.s32 %s11, 2
    %s18 = sadd.s32 %s11, 1
    %s19 = ssub.s32 %s11, %s18
    %p20 = scmp.eq.s32.totalorder %s19, 0
    %s22 = sadd.s32 %s21, 1
    %s23 = scalar_select %p20, %s21, %s22
    %p26 = pneg %p20
    %p27 = scmp.eq.s32.totalorder %s11, 7
    %p28 = por %p26, %p27
    %p29 = scmp.ne.s32.totalorder %s21, %s24
    %p30 = scmp.eq.s32.totalorder %s11, 0
    %p31 = por %p29, %p30
    %p32 = scmp.ne.s32.totalorder %s21, %s24
    %p33 = scmp.eq.s32.totalorder %s16, 7
    %p34 = por %p32, %p33
    %p35 = scmp.ne.s32.totalorder %s24, %s25
    %p36 = scmp.eq.s32.totalorder %s16, 0
    %p37 = por %p35, %p36
    %p38 = scmp.ne.s32.totalorder %s24, %s25
    %p39 = scmp.eq.s32.totalorder %s17, 7
    %p40 = por %p38, %p39
    %p42 = scmp.ne.s32.totalorder %s25, %s41
    %p43 = scmp.eq.s32.totalorder %s17, 0
    %p44 = por %p42, %p43
    %s46 = sadd.s32 %s45, 1
    %p49 = scmp.eq.s32.totalorder %s11, 7
    %p50 = scmp.ne.s32.totalorder %s45, %s47
    %p51 = scmp.eq.s32.totalorder %s11, 0
    %p52 = por %p50, %p51
    %p53 = scmp.ne.s32.totalorder %s45, %s47
    %p54 = scmp.eq.s32.totalorder %s16, 7
    %p55 = por %p53, %p54
    %p56 = scmp.ne.s32.totalorder %s47, %s48
    %p57 = scmp.eq.s32.totalorder %s16, 0
    %p58 = por %p56, %p57
    %p59 = scmp.ne.s32.totalorder %s47, %s48
    %p60 = scmp.eq.s32.totalorder %s17, 7
    %p61 = por %p59, %p60
    %p63 = scmp.ne.s32.totalorder %s48, %s62
    %p64 = scmp.eq.s32.totalorder %s17, 0
    %p65 = por %p63, %p64
    %s67 = sadd.s32 %s66, 1
    %p70 = scmp.eq.s32.totalorder %s11, 7
    %p71 = scmp.ne.s32.totalorder %s66, %s68
    %p72 = scmp.eq.s32.totalorder %s11, 0
    %p73 = por %p71, %p72
    %p74 = scmp.ne.s32.totalorder %s66, %s68
    %p75 = scmp.eq.s32.totalorder %s16, 7
    %p76 = por %p74, %p75
    %p77 = scmp.ne.s32.totalorder %s68, %s69
    %p78 = scmp.eq.s32.totalorder %s16, 0
    %p79 = por %p77, %p78
    %p80 = scmp.ne.s32.totalorder %s68, %s69
    %p81 = scmp.eq.s32.totalorder %s17, 7
    %p82 = por %p80, %p81
    %p84 = scmp.ne.s32.totalorder %s69, %s83
    %p85 = scmp.eq.s32.totalorder %s17, 0
    %p86 = por %p84, %p85
    %s88 = sadd.s32 %s87, 1
    %p91 = scmp.eq.s32.totalorder %s11, 7
    %p92 = scmp.ne.s32.totalorder %s87, %s89
    %p93 = scmp.eq.s32.totalorder %s11, 0
    %p94 = por %p92, %p93
    %p95 = scmp.ne.s32.totalorder %s87, %s89
    %p96 = scmp.eq.s32.totalorder %s16, 7
    %p97 = por %p95, %p96
    %p98 = scmp.ne.s32.totalorder %s89, %s90
    %p99 = scmp.eq.s32.totalorder %s16, 0
    %p100 = por %p98, %p99
    %p101 = scmp.ne.s32.totalorder %s89, %s90
    %p102 = scmp.eq.s32.totalorder %s17, 7
    %p103 = por %p101, %p102
    %p105 = scmp.ne.s32.totalorder %s90, %s104
    %p106 = scmp.eq.s32.totalorder %s17, 0
    %p107 = por %p105, %p106
    %s109 = sadd.s32 %s108, 1
    %p112 = scmp.eq.s32.totalorder %s11, 7
    %p113 = scmp.ne.s32.totalorder %s108, %s110
    %p114 = scmp.eq.s32.totalorder %s11, 0
    %p115 = por %p113, %p114
    %p116 = scmp.ne.s32.totalorder %s108, %s110
    %p117 = scmp.eq.s32.totalorder %s16, 7
    %p118 = por %p116, %p117
    %p119 = scmp.ne.s32.totalorder %s110, %s111
    %p120 = scmp.eq.s32.totalorder %s16, 0
    %p121 = por %p119, %p120
    %p122 = scmp.ne.s32.totalorder %s110, %s111
    %p123 = scmp.eq.s32.totalorder %s17, 7
    %p124 = por %p122, %p123
    %p126 = scmp.ne.s32.totalorder %s111, %s125
    %p127 = scmp.eq.s32.totalorder %s17, 0
    %p128 = por %p126, %p127
    %s129 = ssub.s32 %s11, %s18
    %p130 = scmp.eq.s32.totalorder %s129, 0
    %s132 = sadd.s32 %s131, 1
    %s133 = scalar_select %p130, %s131, %s132
    %p136 = pneg %p130
    %p137 = scmp.eq.s32.totalorder %s11, 7
    %p138 = por %p136, %p137
    %p139 = scmp.ne.s32.totalorder %s131, %s134
    %p140 = scmp.eq.s32.totalorder %s11, 0
    %p141 = por %p139, %p140
    %p142 = scmp.ne.s32.totalorder %s131, %s134
    %p143 = scmp.eq.s32.totalorder %s16, 7
    %p144 = por %p142, %p143
    %p145 = scmp.ne.s32.totalorder %s134, %s135
    %p146 = scmp.eq.s32.totalorder %s16, 0
    %p147 = por %p145, %p146
    %p148 = scmp.ne.s32.totalorder %s134, %s135
    %p149 = scmp.eq.s32.totalorder %s17, 7
    %p150 = por %p148, %p149
    %p152 = scmp.ne.s32.totalorder %s135, %s151
    %p153 = scmp.eq.s32.totalorder %s17, 0
    %p154 = por %p152, %p153
    %p155 = scmp.le.s32.totalorder 1, %s11
    %p156 = scmp.lt.s32.totalorder %s11, 9
    %p157 = pnand %p155, %p156
    %p158 = pneg %p157
    // Predicated region
    $region9: #{tpu_custom_call.1} parent=5 // pred_check
      _
    $region10: #{tpu_custom_call.1} parent=5 // pred_check_branch
      %160 = sbr.rel (%p157) target = $region12
    $region11: #{tpu_custom_call.1} parent=5 // pred_region
      %s161 = ssub.s32 %s11, 1
      // Predicated region
      $region13: #{tpu_custom_call.1} parent=11 // pred_check
        %p162 = pneg %p58
      $region14: #{tpu_custom_call.1} parent=11 // pred_check_branch
        %164 = sbr.rel (%p162) target = $region16
      $region15: #{tpu_custom_call.1} parent=11 // pred_region
        _
      $region16: #{tpu_custom_call.1} parent=11 // pred_fallthru
        _
      // Predicated region
      $region17: #{tpu_custom_call.1} parent=11 // pred_check
        %p165 = pneg %p79
      $region18: #{tpu_custom_call.1} parent=11 // pred_check_branch
        %167 = sbr.rel (%p165) target = $region20
      $region19: #{tpu_custom_call.1} parent=11 // pred_region
        _
      $region20: #{tpu_custom_call.1} parent=11 // pred_fallthru
        _
      // Predicated region
      $region21: #{tpu_custom_call.1} parent=11 // pred_check
        %p168 = pneg %p100
      $region22: #{tpu_custom_call.1} parent=11 // pred_check_branch
        %170 = sbr.rel (%p168) target = $region24
      $region23: #{tpu_custom_call.1} parent=11 // pred_region
        _
      $region24: #{tpu_custom_call.1} parent=11 // pred_fallthru
        _
      // Predicated region
      $region25: #{tpu_custom_call.1} parent=11 // pred_check
        %p171 = pneg %p121
      $region26: #{tpu_custom_call.1} parent=11 // pred_check_branch
        %173 = sbr.rel (%p171) target = $region28
      $region27: #{tpu_custom_call.1} parent=11 // pred_region
        _
      $region28: #{tpu_custom_call.1} parent=11 // pred_fallthru
        _
    $region12: #{tpu_custom_call.1} parent=5 // pred_fallthru
      _
    %p174 = scmp.lt.s32.totalorder %s11, 8
    // Predicated region
    $region29: #{tpu_custom_call.1} parent=5 // pred_check
      %p175 = pneg %p174
    $region30: #{tpu_custom_call.1} parent=5 // pred_check_branch
      %177 = sbr.rel (%p175) target = $region32
    $region31: #{tpu_custom_call.1} parent=5 // pred_region
      // Predicated region
      $region33: #{tpu_custom_call.1} parent=31 // pred_check
        %p178 = pneg %p31
      $region34: #{tpu_custom_call.1} parent=31 // pred_check_branch
        %180 = sbr.rel (%p178) target = $region36
      $region35: #{tpu_custom_call.1} parent=31 // pred_region
        %s181 = smul.u32 2, %s11
        %p182 = scmp.lt.s32.totalorder %s181, 15
        %s183 = scalar_select %p182, %s181, 15
        %s184 = smul.addr %s183, 8
        %s185 = scalar_lea.vmem %s0, %s184
        %s186 = smul.u32 2, %s11
      $region36: #{tpu_custom_call.1} parent=31 // pred_fallthru
        _
    $region32: #{tpu_custom_call.1} parent=5 // pred_fallthru
      _
    %p187 = scmp.le.s32.totalorder 1, %s11
    %p188 = scmp.lt.s32.totalorder %s11, 9
    %p189 = pnand %p187, %p188
    %p190 = pneg %p189
    // Predicated region
    $region37: #{tpu_custom_call.1} parent=5 // pred_check
      _
    $region38: #{tpu_custom_call.1} parent=5 // pred_check_branch
      %192 = sbr.rel (%p189) target = $region40
    $region39: #{tpu_custom_call.1} parent=5 // pred_region
      %s193 = ssub.s32 %s11, 1
      %s194 = smul.u32 2, %s16
      %p195 = scmp.lt.s32.totalorder %s194, 15
      %s196 = scalar_select %p195, %s194, 15
      %s197 = smul.addr %s196, 8
      %s198 = scalar_lea.vmem %s0, %s197
      %p199 = pneg %p37
      %p200 = pneg %p34
      %p201 = pneg %p58
      %p202 = pneg %p55
      %p203 = pneg %p79
      %p204 = pneg %p76
      %p205 = pneg %p100
      %p206 = pneg %p97
      %p207 = pneg %p121
      %p208 = pneg %p118
      %p209 = pneg %p147
      %p210 = pneg %p144
      %s211 = smul.u32 2, %s16
      %p212 = scmp.lt.s32.totalorder %s211, 15
      %s213 = scalar_select %p212, %s211, 15
      %s214 = smul.addr %s213, 8
      %s215 = scalar_lea.vmem %s5, %s214
      %s216 = smul.u32 2, %s16
      %p217 = scmp.lt.s32.totalorder %s216, 15
      %s218 = scalar_select %p217, %s216, 15
      %s219 = smul.addr %s218, 8
      %s220 = scalar_lea.vmem %s0, %s219
      %s221 = smul.u32 2, %s16
      %s222 = smul.u32 2, %s16
      %p223 = scmp.lt.s32.totalorder %s222, 15
      %s224 = scalar_select %p223, %s222, 15
      %s225 = smul.addr %s224, 8
      %s226 = scalar_lea.vmem %s5, %s225
      %s227 = smul.u32 2, %s16
      %v228 = vld [vmem:[%s220] sm:$0xff]
      %v229 = vld [vmem:[%s220 + $0x8] sm:$0xff]
      %v230 = vld [vmem:[%s1] sm:$0xff]
      %v231 = vld [vmem:[%s1 + $0x8] sm:$0xff]
      %v232 = vld [vmem:[%s2] sm:$0x1]
      %v234 = vlaneseq
      %v235 = vshrl.u32 %v234, 7
      %v236 = vsub.s32 0, %v235
      %v237 = vrot.slane %v232, %v236
      %vm239 = vcmask 130048
      %v241 = vsel %vm239, %v228, 0
      %v244 = vsel %vm239, %v229, 0
      %246 = vmatprep.subr.mxu0 0.0
      %247 = vmatpush1.msra.mxu0 %v230
      %248 = vmatprep.subr.mxu0 0.0
      %249 = vmatpush1.msra.mxu0 %v231
      %250 = vmatprep.subr.mxu0 0.0
      %251 = vmatpush1.msra.mxu0 0.0
      %252 = vmatprep.subr.mxu0 0.0
      %253 = vmatpush1.msra.mxu0 0.0
      %254 = vmatprep.subr.mxu0 0.0
      %255 = vmatpush1.msra.mxu0 0.0
      %256 = vmatprep.subr.mxu0 0.0
      %257 = vmatpush1.msra.mxu0 0.0
      %258 = vmatprep.subr.mxu0 0.0
      %259 = vmatpush1.msra.mxu0 0.0
      %260 = vmatprep.subr.mxu0 0.0
      %261 = vmatpush1.msra.mxu0 0.0
      %262 = vmatprep.subr.mxu0 0.0
      %263 = vmatpush1.msra.mxu0 0.0
      %264 = vmatprep.subr.mxu0 0.0
      %265 = vmatpush1.msra.mxu0 0.0
      %266 = vmatprep.subr.mxu0 0.0
      %267 = vmatpush1.msra.mxu0 0.0
      %268 = vmatprep.subr.mxu0 0.0
      %269 = vmatpush1.msra.mxu0 0.0
      %270 = vmatprep.subr.mxu0 0.0
      %271 = vmatpush1.msra.mxu0 0.0
      %272 = vmatprep.subr.mxu0 0.0
      %273 = vmatpush1.msra.mxu0 0.0
      %274 = vmatprep.subr.mxu0 0.0
      %275 = vmatpush1.msra.mxu0 0.0
      %276 = vmatprep.subr.mxu0 0.0
      %277 = vmatpush1.msra.mxu0 0.0
      %278 = vmatprep.subr.mxu0 0.0
      %279 = vmatpush1.msra.mxu0 0.0
      %280 = vmatprep.subr.mxu0 0.0
      %281 = vmatpush1.msra.mxu0 0.0
      %282 = vmatprep.subr.mxu0 0.0
      %283 = vmatpush1.msra.mxu0 0.0
      %284 = vmatprep.subr.mxu0 0.0
      %285 = vmatpush1.msra.mxu0 0.0
      %286 = vmatprep.subr.mxu0 0.0
      %287 = vmatpush1.msra.mxu0 0.0
      %288 = vmatprep.subr.mxu0 0.0
      %289 = vmatpush1.msra.mxu0 0.0
      %290 = vmatprep.subr.mxu0 0.0
      %291 = vmatpush1.msra.mxu0 0.0
      %292 = vmatprep.subr.mxu0 0.0
      %293 = vmatpush1.msra.mxu0 0.0
      %294 = vmatprep.subr.mxu0 0.0
      %295 = vmatpush1.msra.mxu0 0.0
      %296 = vmatprep.subr.mxu0 0.0
      %297 = vmatpush1.msra.mxu0 0.0
      %298 = vmatprep.subr.mxu0 0.0
      %299 = vmatpush1.msra.mxu0 0.0
      %300 = vmatprep.subr.mxu0 0.0
      %301 = vmatpush1.msra.mxu0 0.0
      %302 = vmatprep.subr.mxu0 0.0
      %303 = vmatpush1.msra.mxu0 0.0
      %304 = vmatprep.subr.mxu0 0.0
      %305 = vmatpush1.msra.mxu0 0.0
      %306 = vmatprep.subr.mxu0 0.0
      %307 = vmatpush1.msra.mxu0 0.0
      %308 = vmatprep.subr.mxu0 0.0
      %309 = vmatpush1.msra.mxu0 0.0
      %310 = vmatprep.mubr.f32.mxu0 0.0
      %311 = vmatmul.mubr.f32.gmra.mrb[0].mxu0 %v241
      %v312 = vpop.f32.mrb[0].mxu0
      %v313 = vadd.f32 %v237, %v312
      %v314 = vpop.f32.mrb[0].mxu0
      %315 = vmatprep.mubr.f32.mxu0 0.0
      %316 = vmatmul.mubr.f32.gmra.mrb[0].mxu0 %v244
      %v317 = vpop.f32.mrb[0].mxu0
      %v318 = vadd.f32 %v237, %v317
      %v319 = vpop.f32.mrb[0].mxu0
      %320 = vdwg.mxu0
      %vm321 = vcmask 64512
      %v322 = vsel %vm321, %v313, 0.0
      %323 = vadd.xlane.f32.xlu0 %v322
      %v324 = vpop.xlane.xlu0 %323
      %v325 = vsel %vm321, %v318, 0.0
      %326 = vadd.xlane.f32.xlu0 %v325
      %v327 = vpop.xlane.xlu0 %326
      %v328 = vrcp.pop 8.0
      %v329 = vmul.f32 %v324, %v328
      %v330 = vmul.f32 %v327, %v328
      %v331 = vsub.f32 %v313, %v329
      %v332 = vsub.f32 %v318, %v330
      %v333 = vmul.f32 %v331, %v331
      %v334 = vmul.f32 %v332, %v332
      %v335 = vsel %vm321, %v333, 0.0
      %336 = vadd.xlane.f32.xlu0 %v335
      %v337 = vpop.xlane.xlu0 %336
      %v338 = vsel %vm321, %v334, 0.0
      %339 = vadd.xlane.f32.xlu0 %v338
      %v340 = vpop.xlane.xlu0 %339
      %v341 = vmul.f32 %v337, %v328
      %v342 = vmul.f32 %v340, %v328
      %v343 = vadd.f32 %v341, 1e-05
      %v344 = vadd.f32 %v342, 1e-05
      %v345 = vrsqrt.pop %v343
      %v346 = vrsqrt.pop %v344
      %v347 = vmul.f32 %v331, %v345
      %v348 = vmul.f32 %v332, %v346
      %v349 = vld [vmem:[%s3] sm:$0x1]
      %v351 = vlaneseq
      %v352 = vshrl.u32 %v351, 7
      %v353 = vsub.s32 0, %v352
      %v354 = vrot.slane %v349, %v353
      %v356 = vmul.f32 %v347, %v354
      %v357 = vmul.f32 %v348, %v354
      %v358 = vld [vmem:[%s4] sm:$0x1]
      %v360 = vlaneseq
      %v361 = vshrl.u32 %v360, 7
      %v362 = vsub.s32 0, %v361
      %v363 = vrot.slane %v358, %v362
      %v365 = vadd.f32 %v356, %v363
      %v366 = vadd.f32 %v357, %v363
      %367 = vst.msk [vmem:[%s226] sm:$0xff] %vm321, %v365
      %368 = vst.msk [vmem:[%s226 + $0x8] sm:$0xff] %vm321, %v366
      %s369 = smul.u32 2, %s16
      %p370 = scmp.lt.s32.totalorder %s369, 15
      %s371 = scalar_select %p370, %s369, 15
      %s372 = smul.addr %s371, 8
      %s373 = scalar_lea.vmem %s5, %s372
      // Predicated region
      $region41: #{tpu_custom_call.1} parent=39 // pred_check
        %p374 = pneg %p144
      $region42: #{tpu_custom_call.1} parent=39 // pred_check_branch
        %376 = sbr.rel (%p374) target = $region44
      $region43: #{tpu_custom_call.1} parent=39 // pred_region
        %s377 = smul.u32 2, %s16
      $region44: #{tpu_custom_call.1} parent=39 // pred_fallthru
        _
    $region40: #{tpu_custom_call.1} parent=5 // pred_fallthru
      _
    %p378 = scmp.le.s32.totalorder 2, %s11
    // Predicated region
    $region45: #{tpu_custom_call.1} parent=5 // pred_check
      %p379 = pneg %p378
    $region46: #{tpu_custom_call.1} parent=5 // pred_check_branch
      %381 = sbr.rel (%p379) target = $region48
    $region47: #{tpu_custom_call.1} parent=5 // pred_region
      %s382 = ssub.s32 %s11, 2
      // Predicated region
      $region49: #{tpu_custom_call.1} parent=47 // pred_check
        %p383 = pneg %p150
      $region50: #{tpu_custom_call.1} parent=47 // pred_check_branch
        %385 = sbr.rel (%p383) target = $region52
      $region51: #{tpu_custom_call.1} parent=47 // pred_region
        %s386 = smul.u32 2, %s17
        %p387 = scmp.lt.s32.totalorder %s386, 15
        %s388 = scalar_select %p387, %s386, 15
        %s389 = smul.addr %s388, 8
        %s390 = scalar_lea.vmem %s5, %s389
      $region52: #{tpu_custom_call.1} parent=47 // pred_fallthru
        _
    $region48: #{tpu_custom_call.1} parent=5 // pred_fallthru
      _
  $region6: #{tpu_custom_call.1} parent=0 // loop_footer
    %s15 = sadd.s32 1, %s11
  $region7: #{tpu_custom_call.1} parent=0 // loop_footer_branch
    %10 = sbr.rel target = $region3
  $region8: #{tpu_custom_call.1} parent=0 // loop_exit
    _

</llo_original>
